<compile_context>
chip_gen: v6e
topology: v6e:2x2x1
jax: 0.10.0
libtpu: 0.0.40
codegen_flags: <defaults>
</compile_context>

<pallas_src>
import functools

import jax
import jax.numpy as jnp
from jax.experimental import pallas as pl
from jax.experimental.pallas import tpu as pltpu


def _round_up(x, m):
    return ((x + m - 1) // m) * m


def _cdiv(a, b):
    return -(-a // b)


def _vmem_budget_bytes():
    """Per-generation VMEM budget: 75% of physical VMEM, conservative fallback."""
    try:
        phys = int(pltpu.get_tpu_info().vmem_capacity_bytes)
    except Exception:
        phys = 64 * 1024 * 1024        # v7x per-TensorCore VMEM -> safe everywhere
    return (phys * 3) // 4             # v7x: 48 MiB, v5e/v6e: 96 MiB


def _step_vmem_bytes(tq, tk, dq, p_pad, ib):
    """Conservative per-grid-step VMEM use.  Every pipelined block is counted
    double-buffered exactly once; minor dims are counted at their 128-lane
    (and 8-sublane) padded size."""
    out = 2 * tq * tk * 4                          # f32 output block (dominant)
    qb = 2 * tq * _round_up(dq, 128) * ib          # query block (lane-padded)
    kb = 2 * p_pad * _round_up(tk, 128) * ib       # pre-projected K^T block
    mb = 2 * 8 * _round_up(tk, 128) * 4            # additive-mask row
    wqb = 2 * _round_up(dq, 8) * p_pad * ib        # resident Wq
    bqb = 2 * 8 * p_pad * 4                        # resident bq
    scr = tq * p_pad * max(ib, 2)                  # Q-projection scratch
    return out + qb + kb + mb + wqb + bqb + scr


def _choose_tiles(batch, lq, lk, dq, p_pad, ib, budget):
    """Budget-driven, batch-independent tile selection (B lives on the grid).

    Aim for a large, lane-dense f32 output slab per step (this kernel is HBM
    output-write-bound on all generations), shrinking to fit the per-generation
    VMEM budget.  Prefer keeping tk large so every output-row writeback stays
    wide and contiguous (matters most on v5e's low HBM bandwidth)."""
    lq_r = _round_up(lq, 8)
    lk_r = _round_up(lk, 128)
    tq = min(lq_r, 1024)
    tk = min(lk_r, 4096)

    while _step_vmem_bytes(tq, tk, dq, p_pad, ib) > budget:
        if tq > 256:
            tq = max(256, tq // 2)
        elif tk > 512:
            tk = max(512, tk // 2)
        elif tq > 8:
            tq = max(8, tq // 2)
        elif tk > 128:
            tk = max(128, tk // 2)
        else:
            break

    # v7x has 2 TensorCores: make sure the "parallel" axes (b, qi) provide at
    # least two iterations whenever the problem size allows it.
    if batch * _cdiv(lq_r, tq) < 2 and lq_r >= 16:
        tq = _round_up(_cdiv(lq_r, 2), 8)
    return tq, tk


def _attn_logits_kernel(q_ref, wq_ref, bq_ref, kt_ref, m_ref, o_ref, q_scratch,
                        *, scale):
    """One (batch, q-tile, k-tile) block of masked mean-over-heads logits.

    q_ref : (1, tq, Dq) compute dtype      wq_ref: (Dq, Pp) compute dtype
    bq_ref: (1, Pp) f32                    kt_ref: (1, Pp, tk) compute dtype
    m_ref : (1, 1, tk) f32 additive mask   o_ref : (1, tq, tk) f32
    q_scratch: (tq, Pp) compute dtype -- scaled Q projection, reused across kj.
    """
    kj = pl.program_id(2)

    # The scaled Q projection only depends on (b, qi): compute it once per
    # q tile (kj == 0) and reuse it for every k tile.  kj is "arbitrary" (runs
    # sequentially per (b, qi) on one core), so the scratch legally carries over.
    @pl.when(kj == 0)
    def _():
        q = jnp.dot(q_ref[0], wq_ref[...], preferred_element_type=jnp.float32)
        # Fold 1/(num_heads*sqrt(head_dim)) into the small (tq, Pp) tensor
        # instead of the large (tq, tk) logits tensor.
        q_scratch[...] = ((q + bq_ref[...]) * scale).astype(q_scratch.dtype)

    # Canonical (M, K) @ (K, N) MXU form -- K^T was produced wrapper-side, so no
    # in-kernel transpose / relayout of the key tile is needed.
    logits = jnp.dot(q_scratch[...], kt_ref[0],
                     preferred_element_type=jnp.float32)           # (tq, tk)
    o_ref[0] = logits + m_ref[0]                                   # bcast rows


def attention_actor_forward(query, keys, params, num_heads, attn_mask=None,
                            *, compute_dtype=jnp.bfloat16):
    """Pallas implementation of AttentionActor.forward."""
    wq, bq, wk, bk = params["wq"], params["bq"], params["wk"], params["bk"]

    single = (query.ndim == 2) and (keys.ndim == 2)
    if query.ndim == 2:
        query = query[None]
    if keys.ndim == 2:
        keys = keys[None]
    if attn_mask is not None and attn_mask.ndim == 1:
        attn_mask = attn_mask[None]

    B, Lq, Dq = query.shape
    Bk, Lk, Dk = keys.shape
    assert B == Bk
    assert Dq == wq.shape[0] and Dk == wk.shape[0]
    P = wq.shape[1]
    assert P % num_heads == 0
    head_dim = P // num_heads
    scale = 1.0 / (num_heads * (head_dim ** 0.5))

    cdt = jnp.dtype(compute_dtype)
    ib = cdt.itemsize
    f32 = jnp.float32
    P_pad = _round_up(P, 128)

    budget = _vmem_budget_bytes()
    tq, tk = _choose_tiles(B, Lq, Lk, Dq, P_pad, ib, budget)
    Lq_pad = _round_up(Lq, tq)
    Lk_pad = _round_up(Lk, tk)

    # Pad the projection dim to 128 lanes with zero columns / zero biases: the
    # zero columns contribute nothing to Q.K^T (bit-identical result).
    wq_p = jnp.pad(wq.astype(f32), ((0, 0), (0, P_pad - P)))
    bq_p = jnp.pad(bq.astype(f32), (0, P_pad - P)).reshape(1, P_pad)
    wk_p = jnp.pad(wk.astype(f32), ((0, 0), (0, P_pad - P)))
    bk_p = jnp.pad(bk.astype(f32), (0, P_pad - P))

    # K projection hoisted wrapper-side (independent of the q tile -> would be
    # recomputed per q tile in-kernel).  Produced already transposed to
    # (B, P_pad, Lk_pad) so the kernel's dot is MXU-native with no relayout.
    kt = jnp.einsum("bkd,dp->bkp", keys.astype(f32), wk_p) + bk_p   # (B,Lk,Pp)
    kt = kt.astype(cdt).transpose(0, 2, 1)                          # (B,Pp,Lk)
    kt = jnp.pad(kt, ((0, 0), (0, 0), (0, Lk_pad - Lk)))

    qp = jnp.pad(query.astype(cdt), ((0, 0), (0, Lq_pad - Lq), (0, 0)))
    wq_c = wq_p.astype(cdt)

    # Additive mask precomputed wrapper-side; padded key columns get 0 additive
    # mask and are sliced off below anyway.
    if attn_mask is None:
        amask = jnp.zeros((B, 1, Lk_pad), f32)
    else:
        amask = ((1.0 - attn_mask.astype(f32)) * (-1e9))[:, None, :]
        amask = jnp.pad(amask, ((0, 0), (0, 0), (0, Lk_pad - Lk)))

    est = _step_vmem_bytes(tq, tk, Dq, P_pad, ib)
    vmem_limit = int(min(budget, max(32 * 1024 * 1024, 2 * est)))

    kernel = functools.partial(_attn_logits_kernel, scale=scale)

    out = pl.pallas_call(
        kernel,
        out_shape=jax.ShapeDtypeStruct((B, Lq_pad, Lk_pad), jnp.float32),
        grid_spec=pltpu.PrefetchScalarGridSpec(
            num_scalar_prefetch=0,
            grid=(B, Lq_pad // tq, Lk_pad // tk),
            in_specs=[
                pl.BlockSpec((1, tq, Dq), lambda b, qi, kj: (b, qi, 0)),   # query
                pl.BlockSpec((Dq, P_pad), lambda b, qi, kj: (0, 0)),       # Wq
                pl.BlockSpec((1, P_pad), lambda b, qi, kj: (0, 0)),        # bq
                pl.BlockSpec((1, P_pad, tk), lambda b, qi, kj: (b, 0, kj)),  # K^T
                pl.BlockSpec((1, 1, tk), lambda b, qi, kj: (b, 0, kj)),    # mask
            ],
            out_specs=pl.BlockSpec((1, tq, tk), lambda b, qi, kj: (b, qi, kj)),
            scratch_shapes=[pltpu.VMEM((tq, P_pad), cdt)],
        ),
        compiler_params=pltpu.CompilerParams(
            dimension_semantics=("parallel", "parallel", "arbitrary"),
            vmem_limit_bytes=vmem_limit),
    )(qp, wq_c, bq_p, kt, amask)

    out = out[:, :Lq, :Lk]
    if single:
        out = out[0]
    return out


def _reference_forward(query, keys, params, num_heads, attn_mask=None):
    """Pure-JAX reference following the PyTorch code literally (per-head, f32)."""
    wq, bq, wk, bk = params["wq"], params["bq"], params["wk"], params["bk"]
    if query.ndim == 2:
        query = query[None]
    if keys.ndim == 2:
        keys = keys[None]
    B, Lq, _ = query.shape
    _, Lk, _ = keys.shape
    P = wq.shape[1]
    hd = P // num_heads
    Q = query @ wq + bq
    K = keys @ wk + bk
    Q = Q.reshape(B, Lq, num_heads, hd).transpose(0, 2, 1, 3)
    K = K.reshape(B, Lk, num_heads, hd).transpose(0, 2, 1, 3)
    aw = jnp.einsum("bhqd,bhkd->bhqk", Q, K) / (hd ** 0.5)
    aw = aw.mean(axis=1)
    if attn_mask is not None:
        aw = aw + (1.0 - attn_mask)[:, None, :] * (-1e9)
    return aw


def init_params(key, state_dim, rule_dim, hidden_dim):
    """Deterministic nn.Linear-style init (uniform in +/- 1/sqrt(fan_in))."""
    k1, k2, k3, k4 = jax.random.split(key, 4)
    bq_bound = 1.0 / (state_dim ** 0.5)
    bk_bound = 1.0 / (rule_dim ** 0.5)
    # Stored transposed vs. PyTorch: wq is (q_dim, proj_dim) so that x @ wq works.
    return {
        "wq": jax.random.uniform(k1, (state_dim, hidden_dim), jnp.float32,
                                 -bq_bound, bq_bound),
        "bq": jax.random.uniform(k2, (hidden_dim,), jnp.float32,
                                 -bq_bound, bq_bound),
        "wk": jax.random.uniform(k3, (rule_dim, hidden_dim), jnp.float32,
                                 -bk_bound, bk_bound),
        "bk": jax.random.uniform(k4, (hidden_dim,), jnp.float32,
                                 -bk_bound, bk_bound),
    }


if __name__ == "__main__":
    # AttentionActor(state_dim=16, rule_dim=24, hidden_dim=32, num_heads=8)
    state_dim, rule_dim, hidden_dim, num_heads = 16, 24, 32, 8
    B, Lq, Lk = 2, 8, 10

    root = jax.random.PRNGKey(0)
    kparam, kq, kk, km = jax.random.split(root, 4)

    params = init_params(kparam, state_dim, rule_dim, hidden_dim)
    query = jax.random.normal(kq, (B, Lq, state_dim), jnp.float32)
    keys = jax.random.normal(kk, (B, Lk, rule_dim), jnp.float32)
    attn_mask = (jax.random.uniform(km, (B, Lk)) > 0.3).astype(jnp.float32)

    ref = _reference_forward(query, keys, params, num_heads, attn_mask)

    # f32 compute path: tight check against the literal per-head reference.
    out_f32 = attention_actor_forward(query, keys, params, num_heads, attn_mask,
                                      compute_dtype=jnp.float32)
    out_f32 = jax.block_until_ready(out_f32)
    assert out_f32.shape == (B, Lq, Lk)
    assert jnp.allclose(out_f32, ref, atol=1e-3, rtol=1e-3), "f32 mismatch vs reference"

    # Default bf16-operand path (f32 accumulate): looser tolerance.
    out_bf16 = attention_actor_forward(query, keys, params, num_heads, attn_mask)
    out_bf16 = jax.block_until_ready(out_bf16)
    assert out_bf16.shape == (B, Lq, Lk)
    assert jnp.allclose(out_bf16, ref, atol=3e-2, rtol=3e-2), "bf16 mismatch vs reference"

    # Unmasked + 2-D (single query / single key) path.
    ref2 = _reference_forward(query[0], keys[0], params, num_heads, None)[0]
    out2 = attention_actor_forward(query[0], keys[0], params, num_heads, None,
                                   compute_dtype=jnp.float32)
    out2 = jax.block_until_ready(out2)
    assert out2.shape == (Lq, Lk)
    assert jnp.allclose(out2, ref2, atol=1e-3, rtol=1e-3), "mismatch vs reference (no mask)"

    print("KERNEL_OK")
</pallas_src>

<mosaic_0001>
module attributes {stable_mosaic.version = 11 : i64} {
  func.func @_attn_logits_kernel(%arg0: i32, %arg1: i32, %arg2: i32, %arg3: memref<1x8x16xf32, #tpu.memory_space<vmem>>, %arg4: memref<16x128xf32, #tpu.memory_space<vmem>>, %arg5: memref<1x128xf32, #tpu.memory_space<vmem>>, %arg6: memref<1x128x128xf32, #tpu.memory_space<vmem>>, %arg7: memref<1x1x128xf32, #tpu.memory_space<vmem>>, %arg8: memref<1x8x128xf32, #tpu.memory_space<vmem>>, %arg9: memref<8x128xf32, #tpu.memory_space<vmem>>) attributes {dimension_semantics = [#tpu.dimension_semantics<parallel>, #tpu.dimension_semantics<parallel>, #tpu.dimension_semantics<arbitrary>], iteration_bounds = array<i64: 2, 1, 1>, scalar_prefetch = 0 : i64, scratch_operands = 1 : i64, tpu.core_type = #tpu.core_type<tc>, window_params = [{transform_indices = @transform_0, window_bounds = array<i64: 1, 8, 16>}, {pipeline_mode = #tpu.pipeline_mode<synchronous>, transform_indices = @transform_1, window_bounds = array<i64: 16, 128>}, {pipeline_mode = #tpu.pipeline_mode<synchronous>, transform_indices = @transform_2, window_bounds = array<i64: 1, 128>}, {transform_indices = @transform_3, window_bounds = array<i64: 1, 128, 128>}, {transform_indices = @transform_4, window_bounds = array<i64: 1, 1, 128>}, {transform_indices = @transform_5, window_bounds = array<i64: 1, 8, 128>}]} {
    %c0_i32 = arith.constant 0 : i32
    %0 = arith.cmpi eq, %arg2, %c0_i32 : i32
    %1 = arith.extui %0 : i1 to i32
    %c0_i32_0 = arith.constant 0 : i32
    %2 = arith.cmpi ne, %1, %c0_i32_0 : i32
    scf.if %2 {
      %c0_11 = arith.constant 0 : index
      %c0_12 = arith.constant 0 : index
      %c0_13 = arith.constant 0 : index
      %14 = vector.load %arg3[%c0_11, %c0_12, %c0_13] : memref<1x8x16xf32, #tpu.memory_space<vmem>>, vector<1x8x16xf32>
      %15 = vector.shape_cast %14 : vector<1x8x16xf32> to vector<8x16xf32>
      %c0_14 = arith.constant 0 : index
      %c0_15 = arith.constant 0 : index
      %16 = vector.load %arg4[%c0_14, %c0_15] : memref<16x128xf32, #tpu.memory_space<vmem>>, vector<16x128xf32>
      %cst_16 = arith.constant dense<0.000000e+00> : vector<8x128xf32>
      %17 = tpu.matmul %15, %16, %cst_16 {dimension_numbers = #tpu.dot_dimension_numbers<[1], [0], [0], [1], [0, 0, 1, 1], [], []>} : vector<8x16xf32>, vector<16x128xf32>, vector<8x128xf32> -> vector<8x128xf32>
      %c0_17 = arith.constant 0 : index
      %c0_18 = arith.constant 0 : index
      %18 = vector.load %arg5[%c0_17, %c0_18] : memref<1x128xf32, #tpu.memory_space<vmem>>, vector<1x128xf32>
      %19 = vector.broadcast %18 : vector<1x128xf32> to vector<8x128xf32>
      %20 = arith.addf %17, %19 : vector<8x128xf32>
      %cst_19 = arith.constant 6.250000e-02 : f32
      %21 = vector.broadcast %cst_19 : f32 to vector<8x128xf32>
      %22 = arith.mulf %20, %21 : vector<8x128xf32>
      %c0_20 = arith.constant 0 : index
      %c0_21 = arith.constant 0 : index
      %23 = vector.load %arg9[%c0_20, %c0_21] : memref<8x128xf32, #tpu.memory_space<vmem>>, vector<8x128xf32>
      tpu.vector_store %arg9[%c0_20, %c0_21], %22 {strides = array<i32>} : memref<8x128xf32, #tpu.memory_space<vmem>>, vector<8x128xf32>,
    } else {
    }
    %c0 = arith.constant 0 : index
    %c0_1 = arith.constant 0 : index
    %3 = vector.load %arg9[%c0, %c0_1] : memref<8x128xf32, #tpu.memory_space<vmem>>, vector<8x128xf32>
    %c0_2 = arith.constant 0 : index
    %c0_3 = arith.constant 0 : index
    %c0_4 = arith.constant 0 : index
    %4 = vector.load %arg6[%c0_2, %c0_3, %c0_4] : memref<1x128x128xf32, #tpu.memory_space<vmem>>, vector<1x128x128xf32>
    %5 = vector.shape_cast %4 : vector<1x128x128xf32> to vector<128x128xf32>
    %cst = arith.constant dense<0.000000e+00> : vector<8x128xf32>
    %6 = tpu.matmul %3, %5, %cst {dimension_numbers = #tpu.dot_dimension_numbers<[1], [0], [0], [1], [0, 0, 1, 1], [], []>} : vector<8x128xf32>, vector<128x128xf32>, vector<8x128xf32> -> vector<8x128xf32>
    %c0_5 = arith.constant 0 : index
    %c0_6 = arith.constant 0 : index
    %c0_7 = arith.constant 0 : index
    %7 = vector.load %arg7[%c0_5, %c0_6, %c0_7] : memref<1x1x128xf32, #tpu.memory_space<vmem>>, vector<1x1x128xf32>
    %8 = vector.shape_cast %7 : vector<1x1x128xf32> to vector<1x128xf32>
    %9 = vector.broadcast %8 : vector<1x128xf32> to vector<8x128xf32>
    %10 = arith.addf %6, %9 : vector<8x128xf32>
    %c0_8 = arith.constant 0 : index
    %c0_9 = arith.constant 0 : index
    %c0_10 = arith.constant 0 : index
    %11 = vector.load %arg8[%c0_8, %c0_9, %c0_10] : memref<1x8x128xf32, #tpu.memory_space<vmem>>, vector<1x8x128xf32>
    %12 = vector.shape_cast %11 : vector<1x8x128xf32> to vector<8x128xf32>
    %13 = vector.shape_cast %10 : vector<8x128xf32> to vector<1x8x128xf32>
    tpu.vector_store %arg8[%c0_8, %c0_9, %c0_10], %13 {strides = array<i32>} : memref<1x8x128xf32, #tpu.memory_space<vmem>>, vector<1x8x128xf32>,
    return
  }
  func.func @transform_0(%arg0: i32, %arg1: i32, %arg2: i32) -> (i32, i32, i32) {
    %c0_i32 = arith.constant 0 : i32
    %c0_i32_0 = arith.constant 0 : i32
    return %arg0, %arg1, %c0_i32 : i32, i32, i32
  }
  func.func @transform_1(%arg0: i32, %arg1: i32, %arg2: i32) -> (i32, i32) {
    %c0_i32 = arith.constant 0 : i32
    %c0_i32_0 = arith.constant 0 : i32
    %c0_i32_1 = arith.constant 0 : i32
    return %c0_i32, %c0_i32_0 : i32, i32
  }
  func.func @transform_2(%arg0: i32, %arg1: i32, %arg2: i32) -> (i32, i32) {
    %c0_i32 = arith.constant 0 : i32
    %c0_i32_0 = arith.constant 0 : i32
    %c0_i32_1 = arith.constant 0 : i32
    return %c0_i32, %c0_i32_0 : i32, i32
  }
  func.func @transform_3(%arg0: i32, %arg1: i32, %arg2: i32) -> (i32, i32, i32) {
    %c0_i32 = arith.constant 0 : i32
    %c0_i32_0 = arith.constant 0 : i32
    return %arg0, %c0_i32, %arg2 : i32, i32, i32
  }
  func.func @transform_4(%arg0: i32, %arg1: i32, %arg2: i32) -> (i32, i32, i32) {
    %c0_i32 = arith.constant 0 : i32
    %c0_i32_0 = arith.constant 0 : i32
    return %arg0, %c0_i32, %arg2 : i32, i32, i32
  }
  func.func @transform_5(%arg0: i32, %arg1: i32, %arg2: i32) -> (i32, i32, i32) {
    %c0_i32 = arith.constant 0 : i32
    return %arg0, %arg1, %arg2 : i32, i32, i32
  }
}

</mosaic_0001>

<llo_original>
// kernel: tpu_custom_call.1
$region0: #{tpu_custom_call.1}
  #allocation0 [shape = 'u32[]', space=smem, size = 0x4, offset = 0x4, fixed_abs, tag = 'smem constant byte address 0x4 - core index']
  #allocation1 [shape = 'u32[144,128]{1,0:T(1,128)}', space=vmem, size = 0x12000, scoped, tag = 'internal scratch']
  #allocation2 [shape = 'f32[8,128]{1,0:T(8,128)}', space=vmem, size = 0x1000, scoped, tag = 'scratch operand']
  %s0 = inlined_call_operand.hbm [shape: f32[2,8,16], index: 0, kind: input, shape index: {}]
  %s1 = inlined_call_operand.hbm [shape: f32[16,128], index: 1, kind: input, shape index: {}]
  %s2 = inlined_call_operand.vmem [shape: f32[1,128], index: 2, kind: input, shape index: {}]
  %s3 = inlined_call_operand.hbm [shape: f32[2,128,128], index: 3, kind: input, shape index: {}]
  %s4 = inlined_call_operand.vmem [shape: f32[2,1,128], index: 4, kind: input, shape index: {}]
  %s5 = inlined_call_operand.hbm [shape: f32[2,8,128], index: 5, kind: output, shape index: {}]
  %s6 = sld [smem:[#allocation0]]
  $region69: #{tpu_custom_call.1} parent=0
    _
  %s8 = ssub.s32 1, %s6
  %s9 = scalar_select 0, %s8, %s6
  $region1: #{tpu_custom_call.1} parent=0
    #allocation3 [shape = 'u8[8192]{0}', space=vmem, size = 0x2000, scoped, tag = 'input window, operand 0']
    #allocation4 [shape = 's32[2]{0}', space=sflag, size = 0x8, scoped, tag = 'scoped memory for tpu_custom_call.1']
    #allocation5 [shape = 's32[2]{0}', space=sflag, size = 0x8, scoped, tag = 'scoped memory for tpu_custom_call.1']
    #allocation6 [shape = 'u8[8192]{0}', space=vmem, size = 0x2000, scoped, tag = 'input window, operand 1, single buffered']
    #allocation7 [shape = 's32[1]{0}', space=sflag, size = 0x4, scoped, tag = 'scoped memory for tpu_custom_call.1']
    #allocation8 [shape = 'u8[131072]{0}', space=vmem, size = 0x20000, scoped, tag = 'input window, operand 3']
    #allocation9 [shape = 'u8[8192]{0}', space=vmem, size = 0x2000, scoped, tag = 'output window, operand 0']
    %10 = vsyncpa [#allocation4], 0
    %s11 = scalar_lea.sflag [#allocation4], 1
    %12 = vsyncpa %s11, 0
    %13 = vsyncpa [#allocation7], 0
    %14 = vsyncpa [#allocation5], 0
    %s15 = scalar_lea.sflag [#allocation5], 1
    %16 = vsyncpa %s15, 0
    loop: start=0, step=1, limit=4
    $region2: #{tpu_custom_call.1} parent=1 // loop_pre_header
      _
    $region3: #{tpu_custom_call.1} parent=1 // loop_header
      %s18 = sphi 0, %s22
      %p19 = scmp.ge.s32.totalorder %s18, 4
      %s25 = sphi 0, %s44
      %s26 = sphi 0, %s40
      %s27 = sphi 0, %s36
      %s28 = sphi 0, %s25
      %s29 = sphi 0, %s26
      %s30 = sphi 0, %s27
      %s31 = sphi 0, %s28
      %s32 = sphi 0, %s29
      %s33 = sphi 0, %s30
      %s49 = sphi 0, %s51
      %s52 = sphi 0, %s49
      %s53 = sphi 0, %s52
      %s69 = sphi 0, %s53
      %s73 = sphi 0, %s73
      %s75 = sphi 0, %s73
      %s76 = sphi 0, %s75
      %s90 = sphi 0, %s76
      %s94 = sphi 0, %s94
      %s96 = sphi 0, %s94
      %s97 = sphi 0, %s96
      %s111 = sphi 0, %s97
      %s119 = sphi 0, %s121
      %s122 = sphi 0, %s119
      %s123 = sphi 0, %s122
      %s139 = sphi 0, %s123
      %s147 = sphi 0, %s149
      %s150 = sphi 0, %s147
      %s151 = sphi 0, %s150
      %s167 = sphi 0, %s151
      %s177 = sphi 0, %s179
      %s180 = sphi 0, %s177
      %s181 = sphi 0, %s180
      %s197 = sphi 0, %s181
    $region4: #{tpu_custom_call.1} parent=1 // loop_header_branch
      %21 = sbr.rel (%p19) target = $region8
    $region5: #{tpu_custom_call.1} parent=1 // loop_body
      %s23 = ssub.s32 %s18, 1
      %s24 = ssub.s32 %s18, 2
      %s34 = sadd.s32 1, %s27
      %p35 = scmp.ge.s32.totalorder %s34, 1
      %s36 = scalar_select %p35, 0, %s34
      %s37 = sadd.s32 1, %s26
      %s38 = scalar_select %p35, %s37, %s26
      %p39 = scmp.ge.s32.totalorder %s38, 1
      %s40 = scalar_select %p39, 0, %s38
      %s41 = sadd.s32 1, %s25
      %s42 = scalar_select %p39, %s41, %s25
      %p43 = scmp.ge.s32.totalorder %s42, 2
      %s44 = scalar_select %p43, 0, %s42
      %s45 = ssub.s32 %s25, %s44
      %s46 = ssub.s32 %s26, %s40
      %s47 = sor.u32 %s45, %s46
      %p48 = scmp.eq.s32.totalorder %s47, 0
      %s50 = sadd.s32 %s49, 1
      %s51 = scalar_select %p48, %s49, %s50
      %p54 = pneg %p48
      %p55 = scmp.eq.s32.totalorder %s18, 1
      %p56 = por %p54, %p55
      %p57 = scmp.ne.s32.totalorder %s49, %s52
      %p58 = scmp.eq.s32.totalorder %s18, 0
      %p59 = por %p57, %p58
      %p60 = scmp.ne.s32.totalorder %s49, %s52
      %p61 = scmp.eq.s32.totalorder %s23, 1
      %p62 = por %p60, %p61
      %p63 = scmp.ne.s32.totalorder %s52, %s53
      %p64 = scmp.eq.s32.totalorder %s23, 0
      %p65 = por %p63, %p64
      %p66 = scmp.ne.s32.totalorder %s52, %s53
      %p67 = scmp.eq.s32.totalorder %s24, 1
      %p68 = por %p66, %p67
      %p70 = scmp.ne.s32.totalorder %s53, %s69
      %p71 = scmp.eq.s32.totalorder %s24, 0
      %p72 = por %p70, %p71
      %s74 = sadd.s32 %s73, 1
      %p77 = scmp.eq.s32.totalorder %s18, 1
      %p78 = scmp.ne.s32.totalorder %s73, %s75
      %p79 = scmp.eq.s32.totalorder %s18, 0
      %p80 = por %p78, %p79
      %p81 = scmp.ne.s32.totalorder %s73, %s75
      %p82 = scmp.eq.s32.totalorder %s23, 1
      %p83 = por %p81, %p82
      %p84 = scmp.ne.s32.totalorder %s75, %s76
      %p85 = scmp.eq.s32.totalorder %s23, 0
      %p86 = por %p84, %p85
      %p87 = scmp.ne.s32.totalorder %s75, %s76
      %p88 = scmp.eq.s32.totalorder %s24, 1
      %p89 = por %p87, %p88
      %p91 = scmp.ne.s32.totalorder %s76, %s90
      %p92 = scmp.eq.s32.totalorder %s24, 0
      %p93 = por %p91, %p92
      %s95 = sadd.s32 %s94, 1
      %p98 = scmp.eq.s32.totalorder %s18, 1
      %p99 = scmp.ne.s32.totalorder %s94, %s96
      %p100 = scmp.eq.s32.totalorder %s18, 0
      %p101 = por %p99, %p100
      %p102 = scmp.ne.s32.totalorder %s94, %s96
      %p103 = scmp.eq.s32.totalorder %s23, 1
      %p104 = por %p102, %p103
      %p105 = scmp.ne.s32.totalorder %s96, %s97
      %p106 = scmp.eq.s32.totalorder %s23, 0
      %p107 = por %p105, %p106
      %p108 = scmp.ne.s32.totalorder %s96, %s97
      %p109 = scmp.eq.s32.totalorder %s24, 1
      %p110 = por %p108, %p109
      %p112 = scmp.ne.s32.totalorder %s97, %s111
      %p113 = scmp.eq.s32.totalorder %s24, 0
      %p114 = por %p112, %p113
      %s115 = ssub.s32 %s25, %s44
      %s116 = ssub.s32 %s27, %s36
      %s117 = sor.u32 %s115, %s116
      %p118 = scmp.eq.s32.totalorder %s117, 0
      %s120 = sadd.s32 %s119, 1
      %s121 = scalar_select %p118, %s119, %s120
      %p124 = pneg %p118
      %p125 = scmp.eq.s32.totalorder %s18, 1
      %p126 = por %p124, %p125
      %p127 = scmp.ne.s32.totalorder %s119, %s122
      %p128 = scmp.eq.s32.totalorder %s18, 0
      %p129 = por %p127, %p128
      %p130 = scmp.ne.s32.totalorder %s119, %s122
      %p131 = scmp.eq.s32.totalorder %s23, 1
      %p132 = por %p130, %p131
      %p133 = scmp.ne.s32.totalorder %s122, %s123
      %p134 = scmp.eq.s32.totalorder %s23, 0
      %p135 = por %p133, %p134
      %p136 = scmp.ne.s32.totalorder %s122, %s123
      %p137 = scmp.eq.s32.totalorder %s24, 1
      %p138 = por %p136, %p137
      %p140 = scmp.ne.s32.totalorder %s123, %s139
      %p141 = scmp.eq.s32.totalorder %s24, 0
      %p142 = por %p140, %p141
      %s143 = ssub.s32 %s25, %s44
      %s144 = ssub.s32 %s27, %s36
      %s145 = sor.u32 %s143, %s144
      %p146 = scmp.eq.s32.totalorder %s145, 0
      %s148 = sadd.s32 %s147, 1
      %s149 = scalar_select %p146, %s147, %s148
      %p152 = pneg %p146
      %p153 = scmp.eq.s32.totalorder %s18, 1
      %p154 = por %p152, %p153
      %p155 = scmp.ne.s32.totalorder %s147, %s150
      %p156 = scmp.eq.s32.totalorder %s18, 0
      %p157 = por %p155, %p156
      %p158 = scmp.ne.s32.totalorder %s147, %s150
      %p159 = scmp.eq.s32.totalorder %s23, 1
      %p160 = por %p158, %p159
      %p161 = scmp.ne.s32.totalorder %s150, %s151
      %p162 = scmp.eq.s32.totalorder %s23, 0
      %p163 = por %p161, %p162
      %p164 = scmp.ne.s32.totalorder %s150, %s151
      %p165 = scmp.eq.s32.totalorder %s24, 1
      %p166 = por %p164, %p165
      %p168 = scmp.ne.s32.totalorder %s151, %s167
      %p169 = scmp.eq.s32.totalorder %s24, 0
      %p170 = por %p168, %p169
      %s171 = ssub.s32 %s25, %s44
      %s172 = ssub.s32 %s26, %s40
      %s173 = sor.u32 %s171, %s172
      %s174 = ssub.s32 %s27, %s36
      %s175 = sor.u32 %s173, %s174
      %p176 = scmp.eq.s32.totalorder %s175, 0
      %s178 = sadd.s32 %s177, 1
      %s179 = scalar_select %p176, %s177, %s178
      %p182 = pneg %p176
      %p183 = scmp.eq.s32.totalorder %s18, 1
      %p184 = por %p182, %p183
      %p185 = scmp.ne.s32.totalorder %s177, %s180
      %p186 = scmp.eq.s32.totalorder %s18, 0
      %p187 = por %p185, %p186
      %p188 = scmp.ne.s32.totalorder %s177, %s180
      %p189 = scmp.eq.s32.totalorder %s23, 1
      %p190 = por %p188, %p189
      %p191 = scmp.ne.s32.totalorder %s180, %s181
      %p192 = scmp.eq.s32.totalorder %s23, 0
      %p193 = por %p191, %p192
      %p194 = scmp.ne.s32.totalorder %s180, %s181
      %p195 = scmp.eq.s32.totalorder %s24, 1
      %p196 = por %p194, %p195
      %p198 = scmp.ne.s32.totalorder %s181, %s197
      %p199 = scmp.eq.s32.totalorder %s24, 0
      %p200 = por %p198, %p199
      %p201 = scmp.le.s32.totalorder 1, %s18
      %p202 = scmp.lt.s32.totalorder %s18, 3
      %p203 = pnand %p201, %p202
      %p204 = pneg %p203
      // Predicated region
      $region9: #{tpu_custom_call.1} parent=5 // pred_check
        _
      $region10: #{tpu_custom_call.1} parent=5 // pred_check_branch
        %206 = sbr.rel (%p203) target = $region12
      $region11: #{tpu_custom_call.1} parent=5 // pred_region
        %s207 = ssub.s32 %s18, 1
        // Predicated region
        $region13: #{tpu_custom_call.1} parent=11 // pred_check
          %p208 = pneg %p86
        $region14: #{tpu_custom_call.1} parent=11 // pred_check_branch
          %210 = sbr.rel (%p208) target = $region16
        $region15: #{tpu_custom_call.1} parent=11 // pred_region
          %s212 = ssub.s32 256, 256
          %213 = vsyncadd [#allocation7], %s212
          %s214 = sshll.u32 [#allocation6], 4
          %s215 = int_to_ptr.vmem [resolvable:$true] %s214
          %220 = dma.hbm_to_vmem [thread:$0]  %s1, 256, %s215, [#allocation7], 128, 128, 8
        $region16: #{tpu_custom_call.1} parent=11 // pred_fallthru
          _
        // Predicated region
        $region17: #{tpu_custom_call.1} parent=11 // pred_check
          %p221 = pneg %p107
        $region18: #{tpu_custom_call.1} parent=11 // pred_check_branch
          %223 = sbr.rel (%p221) target = $region20
        $region19: #{tpu_custom_call.1} parent=11 // pred_region
          _
        $region20: #{tpu_custom_call.1} parent=11 // pred_fallthru
          _
      $region12: #{tpu_custom_call.1} parent=5 // pred_fallthru
        _
      %p224 = scmp.lt.s32.totalorder %s18, 2
      // Predicated region
      $region21: #{tpu_custom_call.1} parent=5 // pred_check
        %p225 = pneg %p224
      $region22: #{tpu_custom_call.1} parent=5 // pred_check_branch
        %227 = sbr.rel (%p225) target = $region24
      $region23: #{tpu_custom_call.1} parent=5 // pred_region
        // Predicated region
        $region25: #{tpu_custom_call.1} parent=23 // pred_check
          %p228 = pneg %p59
        $region26: #{tpu_custom_call.1} parent=23 // pred_check_branch
          %230 = sbr.rel (%p228) target = $region28
        $region27: #{tpu_custom_call.1} parent=23 // pred_region
          %s231 = sand.u32 %s18, 1
          %s232 = scalar_lea.sflag [#allocation4], %s231
          %s233 = sand.u32 %s49, 1
          %s234 = smul.addr %s233, 8
          %s235 = scalar_lea.vmem [#allocation3], %s234
          %s237 = ssub.s32 128, 128
          %238 = vsyncadd %s232, %s237
          %s239 = sadd.s32 %s26, %s25
          %s240 = smul.addr %s239, 128
          %s241 = scalar_lea.hbm %s0, %s240
          %s243 = sshll.u32 %s235, 4
          %s244 = int_to_ptr.vmem [resolvable:$true] %s243
          %246 = dma.hbm_to_vmem [thread:$0]  %s241, 128, %s244, %s232
        $region28: #{tpu_custom_call.1} parent=23 // pred_fallthru
          _
        // Predicated region
        $region29: #{tpu_custom_call.1} parent=23 // pred_check
          %p247 = pneg %p129
        $region30: #{tpu_custom_call.1} parent=23 // pred_check_branch
          %249 = sbr.rel (%p247) target = $region32
        $region31: #{tpu_custom_call.1} parent=23 // pred_region
          %s250 = sand.u32 %s18, 1
          %s251 = scalar_lea.sflag [#allocation4], %s250
          %s252 = sand.u32 %s119, 1
          %s253 = smul.addr %s252, 128
          %s254 = scalar_lea.vmem [#allocation8], %s253
          %s256 = ssub.s32 2048, 2048
          %257 = vsyncadd %s251, %s256
          %s258 = smul.addr %s25, 16
          %s259 = sadd.s32 %s27, %s258
          %s260 = smul.addr %s259, 128
          %s261 = scalar_lea.hbm %s3, %s260
          %s262 = sshll.u32 %s254, 4
          %s263 = int_to_ptr.vmem [resolvable:$true] %s262
          %268 = dma.hbm_to_vmem [thread:$0]  %s261, 2048, %s263, %s251, 128, 128, 8
        $region32: #{tpu_custom_call.1} parent=23 // pred_fallthru
          _
        // Predicated region
        $region33: #{tpu_custom_call.1} parent=23 // pred_check
          %p269 = pneg %p157
        $region34: #{tpu_custom_call.1} parent=23 // pred_check_branch
          %271 = sbr.rel (%p269) target = $region36
        $region35: #{tpu_custom_call.1} parent=23 // pred_region
          %p272 = scmp.lt.s32.totalorder %s25, 1
          %s273 = scalar_select %p272, %s25, 1
          %p274 = scmp.lt.s32.totalorder %s27, 0
          %s275 = scalar_select %p274, %s27, 0
          %s276 = sadd.s32 %s275, %s273
          %s277 = scalar_lea.vmem %s4, %s276
        $region36: #{tpu_custom_call.1} parent=23 // pred_fallthru
          _
      $region24: #{tpu_custom_call.1} parent=5 // pred_fallthru
        _
      %p278 = scmp.le.s32.totalorder 1, %s18
      %p279 = scmp.lt.s32.totalorder %s18, 3
      %p280 = pnand %p278, %p279
      %p281 = pneg %p280
      // Predicated region
      $region37: #{tpu_custom_call.1} parent=5 // pred_check
        _
      $region38: #{tpu_custom_call.1} parent=5 // pred_check_branch
        %283 = sbr.rel (%p280) target = $region40
      $region39: #{tpu_custom_call.1} parent=5 // pred_region
        %s284 = ssub.s32 %s18, 1
        %s285 = sand.u32 %s23, 1
        %s286 = scalar_lea.sflag [#allocation4], %s285
        %s287 = sand.u32 %s52, 1
        %s288 = smul.addr %s287, 8
        %s289 = scalar_lea.vmem [#allocation3], %s288
        // Predicated region
        $region41: #{tpu_custom_call.1} parent=39 // pred_check
          %p290 = pneg %p65
        $region42: #{tpu_custom_call.1} parent=39 // pred_check_branch
          %292 = sbr.rel (%p290) target = $region44
        $region43: #{tpu_custom_call.1} parent=39 // pred_region
          %293 = dma.done %s286, 128
        $region44: #{tpu_custom_call.1} parent=39 // pred_fallthru
          _
        // Predicated region
        $region45: #{tpu_custom_call.1} parent=39 // pred_check
          %p294 = pneg %p86
        $region46: #{tpu_custom_call.1} parent=39 // pred_check_branch
          %296 = sbr.rel (%p294) target = $region48
        $region47: #{tpu_custom_call.1} parent=39 // pred_region
          %297 = dma.done [#allocation7], 256
        $region48: #{tpu_custom_call.1} parent=39 // pred_fallthru
          _
        %s298 = sand.u32 %s23, 1
        %s299 = scalar_lea.sflag [#allocation4], %s298
        %s300 = sand.u32 %s122, 1
        %s301 = smul.addr %s300, 128
        %s302 = scalar_lea.vmem [#allocation8], %s301
        // Predicated region
        $region49: #{tpu_custom_call.1} parent=39 // pred_check
          %p303 = pneg %p135
        $region50: #{tpu_custom_call.1} parent=39 // pred_check_branch
          %305 = sbr.rel (%p303) target = $region52
        $region51: #{tpu_custom_call.1} parent=39 // pred_region
          %306 = dma.done %s299, 2048
        $region52: #{tpu_custom_call.1} parent=39 // pred_fallthru
          _
        %s307 = sand.u32 %s23, 1
        %s308 = scalar_lea.sflag [#allocation4], %s307
        %s309 = sand.u32 %s52, 1
        %s310 = smul.addr %s309, 8
        %s311 = scalar_lea.vmem [#allocation3], %s310
        %p312 = pneg %p65
        %p313 = pneg %p62
        %p314 = pneg %p86
        %p315 = pneg %p83
        %p316 = pneg %p107
        %p317 = pneg %p104
        %s318 = sand.u32 %s23, 1
        %s319 = scalar_lea.sflag [#allocation4], %s318
        %s320 = sand.u32 %s122, 1
        %s321 = smul.addr %s320, 128
        %s322 = scalar_lea.vmem [#allocation8], %s321
        %p323 = pneg %p135
        %p324 = pneg %p132
        %p325 = scmp.lt.s32.totalorder %s28, 1
        %s326 = scalar_select %p325, %s28, 1
        %p327 = scmp.lt.s32.totalorder %s30, 0
        %s328 = scalar_select %p327, %s30, 0
        %s329 = sadd.s32 %s328, %s326
        %s330 = scalar_lea.vmem %s4, %s329
        %p331 = pneg %p163
        %p332 = pneg %p160
        %p333 = pneg %p193
        %p334 = pneg %p190
        %s335 = sand.u32 %s180, 1
        %s336 = scalar_lea.sflag [#allocation5], %s335
        %s337 = sand.u32 %s180, 1
        %s338 = smul.addr %s337, 8
        %s339 = scalar_lea.vmem [#allocation9], %s338
        %p340 = scmp.lt.s32.totalorder %s28, 1
        %s341 = scalar_select %p340, %s28, 1
        %p342 = scmp.lt.s32.totalorder %s30, 0
        %s343 = scalar_select %p342, %s30, 0
        %s344 = sadd.s32 %s343, %s341
        %s345 = scalar_lea.vmem %s4, %s344
        %p346 = scmp.eq.s32.totalorder %s30, 0
        // Predicated region
        $region53: #{tpu_custom_call.1} parent=39 // pred_check
          %p347 = pneg %p346
        $region54: #{tpu_custom_call.1} parent=39 // pred_check_branch
          %349 = sbr.rel (%p347) target = $region56
        $region55: #{tpu_custom_call.1} parent=39 // pred_region
          %v350 = vld [vmem:[%s289] sm:$0xff]
          %v351 = vld [vmem:[#allocation6] sm:$0xff]
          %v352 = vld [vmem:[#allocation6 + $0x8] sm:$0xff]
          %v353 = vld [vmem:[%s2] sm:$0x1]
          %v355 = vlaneseq
          %v356 = vshrl.u32 %v355, 7
          %v357 = vsub.s32 0, %v356
          %v358 = vrot.slane %v353, %v357
          %vm360 = vcmask 130048
          %v362 = vsel %vm360, %v350, 0
          %364 = vmatprep.subr.mxu0 0.0
          %365 = vmatpush1.msra.mxu0 0.0
          %366 = vmatprep.subr.mxu0 0.0
          %367 = vmatpush1.msra.mxu0 0.0
          %368 = vmatprep.subr.mxu0 0.0
          %369 = vmatpush1.msra.mxu0 0.0
          %370 = vmatprep.subr.mxu0 0.0
          %371 = vmatpush1.msra.mxu0 0.0
          %372 = vmatprep.subr.mxu0 0.0
          %373 = vmatpush1.msra.mxu0 0.0
          %374 = vmatprep.subr.mxu0 0.0
          %375 = vmatpush1.msra.mxu0 0.0
          %376 = vmatprep.subr.mxu0 0.0
          %377 = vmatpush1.msra.mxu0 0.0
          %378 = vmatprep.subr.mxu0 0.0
          %379 = vmatpush1.msra.mxu0 0.0
          %380 = vmatprep.subr.mxu0 0.0
          %381 = vmatpush1.msra.mxu0 0.0
          %382 = vmatprep.subr.mxu0 0.0
          %383 = vmatpush1.msra.mxu0 0.0
          %384 = vmatprep.subr.mxu0 0.0
          %385 = vmatpush1.msra.mxu0 0.0
          %386 = vmatprep.subr.mxu0 0.0
          %387 = vmatpush1.msra.mxu0 0.0
          %388 = vmatprep.subr.mxu0 0.0
          %389 = vmatpush1.msra.mxu0 0.0
          %390 = vmatprep.subr.mxu0 0.0
          %391 = vmatpush1.msra.mxu0 0.0
          %392 = vmatprep.subr.mxu0 0.0
          %393 = vmatpush1.msra.mxu0 %v352
          %394 = vmatprep.subr.mxu0 0.0
          %395 = vmatpush1.msra.mxu0 %v351
          %396 = vmatprep.subr.mxu0 0.0
          %397 = vmatpush2.msra.mxu0 0.0
          %398 = vmatprep.subr.mxu0 0.0
          %399 = vmatpush2.msra.mxu0 0.0
          %400 = vmatprep.subr.mxu0 0.0
          %401 = vmatpush2.msra.mxu0 0.0
          %402 = vmatprep.subr.mxu0 0.0
          %403 = vmatpush2.msra.mxu0 0.0
          %404 = vmatprep.subr.mxu0 0.0
          %405 = vmatpush2.msra.mxu0 0.0
          %406 = vmatprep.subr.mxu0 0.0
          %407 = vmatpush2.msra.mxu0 0.0
          %408 = vmatprep.subr.mxu0 0.0
          %409 = vmatpush2.msra.mxu0 0.0
          %410 = vmatprep.subr.mxu0 0.0
          %411 = vmatpush2.msra.mxu0 0.0
          %412 = vmatprep.subr.mxu0 0.0
          %413 = vmatpush2.msra.mxu0 0.0
          %414 = vmatprep.subr.mxu0 0.0
          %415 = vmatpush2.msra.mxu0 0.0
          %416 = vmatprep.subr.mxu0 0.0
          %417 = vmatpush2.msra.mxu0 0.0
          %418 = vmatprep.subr.mxu0 0.0
          %419 = vmatpush2.msra.mxu0 0.0
          %420 = vmatprep.subr.mxu0 0.0
          %421 = vmatpush2.msra.mxu0 0.0
          %422 = vmatprep.subr.mxu0 0.0
          %423 = vmatpush2.msra.mxu0 0.0
          %424 = vmatprep.subr.mxu0 0.0
          %425 = vmatpush2.msra.mxu0 0.0
          %426 = vmatprep.subr.mxu0 0.0
          %427 = vmatpush2.msra.mxu0 0.0
          %428 = vmatprep.mubr.f32.mxu0 0.0
          %429 = vmatmul.mubr.f32.gmra.mxu0 %v362
          %v430 = vpop.f32.mrf.mxu0
          %v431 = vadd.f32 %v358, %v430
          %v432 = vpop.f32.mrf.mxu0
          %433 = vdwg.mxu0
          %v434 = vmul.f32 %v431, 0.0625
          %435 = vst [vmem:[#allocation2] sm:$0xff] %v434
        $region56: #{tpu_custom_call.1} parent=39 // pred_fallthru
          _
        %v436 = vld [vmem:[#allocation2] sm:$0xff]
        %v437 = vld [vmem:[%s302] sm:$0xff]
        %v438 = vld [vmem:[%s302 + $0x8] sm:$0xff]
        %v439 = vld [vmem:[%s302 + $0x10] sm:$0xff]
        %v440 = vld [vmem:[%s302 + $0x18] sm:$0xff]
        %v441 = vld [vmem:[%s302 + $0x20] sm:$0xff]
        %v442 = vld [vmem:[%s302 + $0x28] sm:$0xff]
        %v443 = vld [vmem:[%s302 + $0x30] sm:$0xff]
        %v444 = vld [vmem:[%s302 + $0x38] sm:$0xff]
        %v445 = vld [vmem:[%s302 + $0x40] sm:$0xff]
        %v446 = vld [vmem:[%s302 + $0x48] sm:$0xff]
        %v447 = vld [vmem:[%s302 + $0x50] sm:$0xff]
        %v448 = vld [vmem:[%s302 + $0x58] sm:$0xff]
        %v449 = vld [vmem:[%s302 + $0x60] sm:$0xff]
        %v450 = vld [vmem:[%s302 + $0x68] sm:$0xff]
        %v451 = vld [vmem:[%s302 + $0x70] sm:$0xff]
        %v452 = vld [vmem:[%s302 + $0x78] sm:$0xff]
        %v453 = vld [vmem:[%s345] sm:$0x1]
        %v455 = vlaneseq
        %v456 = vshrl.u32 %v455, 7
        %v457 = vsub.s32 0, %v456
        %v458 = vrot.slane %v453, %v457
        %460 = vmatprep.subr.mxu0 0.0
        %461 = vmatpush1.msra.mxu0 %v452
        %462 = vmatprep.subr.mxu0 0.0
        %463 = vmatpush1.msra.mxu0 %v451
        %464 = vmatprep.subr.mxu0 0.0
        %465 = vmatpush1.msra.mxu0 %v450
        %466 = vmatprep.subr.mxu0 0.0
        %467 = vmatpush1.msra.mxu0 %v449
        %468 = vmatprep.subr.mxu0 0.0
        %469 = vmatpush1.msra.mxu0 %v448
        %470 = vmatprep.subr.mxu0 0.0
        %471 = vmatpush1.msra.mxu0 %v447
        %472 = vmatprep.subr.mxu0 0.0
        %473 = vmatpush1.msra.mxu0 %v446
        %474 = vmatprep.subr.mxu0 0.0
        %475 = vmatpush1.msra.mxu0 %v445
        %476 = vmatprep.subr.mxu0 0.0
        %477 = vmatpush1.msra.mxu0 %v444
        %478 = vmatprep.subr.mxu0 0.0
        %479 = vmatpush1.msra.mxu0 %v443
        %480 = vmatprep.subr.mxu0 0.0
        %481 = vmatpush1.msra.mxu0 %v442
        %482 = vmatprep.subr.mxu0 0.0
        %483 = vmatpush1.msra.mxu0 %v441
        %484 = vmatprep.subr.mxu0 0.0
        %485 = vmatpush1.msra.mxu0 %v440
        %486 = vmatprep.subr.mxu0 0.0
        %487 = vmatpush1.msra.mxu0 %v439
        %488 = vmatprep.subr.mxu0 0.0
        %489 = vmatpush1.msra.mxu0 %v438
        %490 = vmatprep.subr.mxu0 0.0
        %491 = vmatpush1.msra.mxu0 %v437
        %492 = vmatprep.subr.mxu0 0.0
        %493 = vmatpush2.msra.mxu0 0.0
        %494 = vmatprep.subr.mxu0 0.0
        %495 = vmatpush2.msra.mxu0 0.0
        %496 = vmatprep.subr.mxu0 0.0
        %497 = vmatpush2.msra.mxu0 0.0
        %498 = vmatprep.subr.mxu0 0.0
        %499 = vmatpush2.msra.mxu0 0.0
        %500 = vmatprep.subr.mxu0 0.0
        %501 = vmatpush2.msra.mxu0 0.0
        %502 = vmatprep.subr.mxu0 0.0
        %503 = vmatpush2.msra.mxu0 0.0
        %504 = vmatprep.subr.mxu0 0.0
        %505 = vmatpush2.msra.mxu0 0.0
        %506 = vmatprep.subr.mxu0 0.0
        %507 = vmatpush2.msra.mxu0 0.0
        %508 = vmatprep.subr.mxu0 0.0
        %509 = vmatpush2.msra.mxu0 0.0
        %510 = vmatprep.subr.mxu0 0.0
        %511 = vmatpush2.msra.mxu0 0.0
        %512 = vmatprep.subr.mxu0 0.0
        %513 = vmatpush2.msra.mxu0 0.0
        %514 = vmatprep.subr.mxu0 0.0
        %515 = vmatpush2.msra.mxu0 0.0
        %516 = vmatprep.subr.mxu0 0.0
        %517 = vmatpush2.msra.mxu0 0.0
        %518 = vmatprep.subr.mxu0 0.0
        %519 = vmatpush2.msra.mxu0 0.0
        %520 = vmatprep.subr.mxu0 0.0
        %521 = vmatpush2.msra.mxu0 0.0
        %522 = vmatprep.subr.mxu0 0.0
        %523 = vmatpush2.msra.mxu0 0.0
        %524 = vmatprep.mubr.f32.mxu0 0.0
        %525 = vmatmul.mubr.f32.gmra.mxu0 %v436
        %v526 = vpop.f32.mrf.mxu0
        %v527 = vadd.f32 %v458, %v526
        %v528 = vpop.f32.mrf.mxu0
        %529 = vdwg.mxu0
        %530 = vst [vmem:[%s339] sm:$0xff] %v527
        %s531 = sand.u32 %s180, 1
        %s532 = scalar_lea.sflag [#allocation5], %s531
        %s533 = sand.u32 %s180, 1
        %s534 = smul.addr %s533, 8
        %s535 = scalar_lea.vmem [#allocation9], %s534
        // Predicated region
        $region57: #{tpu_custom_call.1} parent=39 // pred_check
          %p536 = pneg %p190
        $region58: #{tpu_custom_call.1} parent=39 // pred_check_branch
          %538 = sbr.rel (%p536) target = $region60
        $region59: #{tpu_custom_call.1} parent=39 // pred_region
          %s540 = ssub.s32 128, 128
          %541 = vsyncadd %s532, %s540
          %s542 = sadd.s32 %s30, %s29
          %s543 = sadd.s32 %s542, %s28
          %s544 = smul.addr %s543, 128
          %s545 = scalar_lea.hbm %s5, %s544
          %s547 = sshll.u32 %s535, 4
          %s548 = int_to_ptr.vmem [resolvable:$true] %s547
          %550 = dma.vmem_to_hbm [thread:$0]  %s548, 128, %s545, %s532
        $region60: #{tpu_custom_call.1} parent=39 // pred_fallthru
          _
      $region40: #{tpu_custom_call.1} parent=5 // pred_fallthru
        _
      %p551 = scmp.le.s32.totalorder 2, %s18
      // Predicated region
      $region61: #{tpu_custom_call.1} parent=5 // pred_check
        %p552 = pneg %p551
      $region62: #{tpu_custom_call.1} parent=5 // pred_check_branch
        %554 = sbr.rel (%p552) target = $region64
      $region63: #{tpu_custom_call.1} parent=5 // pred_region
        %s555 = ssub.s32 %s18, 2
        // Predicated region
        $region65: #{tpu_custom_call.1} parent=63 // pred_check
          %p556 = pneg %p196
        $region66: #{tpu_custom_call.1} parent=63 // pred_check_branch
          %558 = sbr.rel (%p556) target = $region68
        $region67: #{tpu_custom_call.1} parent=63 // pred_region
          %s559 = sand.u32 %s181, 1
          %s560 = scalar_lea.sflag [#allocation5], %s559
          %s561 = sand.u32 %s181, 1
          %s562 = smul.addr %s561, 8
          %s563 = scalar_lea.vmem [#allocation9], %s562
          %564 = dma.done %s560, 128
        $region68: #{tpu_custom_call.1} parent=63 // pred_fallthru
          _
      $region64: #{tpu_custom_call.1} parent=5 // pred_fallthru
        _
    $region6: #{tpu_custom_call.1} parent=1 // loop_footer
      %s22 = sadd.s32 1, %s18
    $region7: #{tpu_custom_call.1} parent=1 // loop_footer_branch
      %17 = sbr.rel target = $region3
    $region8: #{tpu_custom_call.1} parent=1 // loop_exit
      _
    %565 = vsyncpa [#allocation4], 1
    %s566 = scalar_lea.sflag [#allocation4], 1
    %567 = vsyncpa %s566, 1
    %568 = vsyncpa [#allocation7], 1
    %569 = vsyncpa [#allocation5], 1
    %s570 = scalar_lea.sflag [#allocation5], 1
    %571 = vsyncpa %s570, 1

</llo_original>
